<compile_context>
chip_gen: v6e
topology: v6e:2x2x1
jax: 0.10.0
libtpu: 0.0.40
codegen_flags: <defaults>
</compile_context>

<pallas_src>
import functools

import jax
import jax.numpy as jnp
from jax import lax
from jax.experimental import pallas as pl
from jax.experimental.pallas import tpu as pltpu


# ---------------------------------------------------------------------------
# block-size helpers
# ---------------------------------------------------------------------------
def _divisors(n, multiple_of=1):
    out = []
    for b in range(1, n + 1):
        if n % b:
            continue
        if multiple_of > 1 and b % multiple_of and b != n:
            continue
        out.append(b)
    return out


def _pick_block(n, unit_bytes, target_bytes, *, multiple_of=1):
    """Largest divisor b of n with b*unit_bytes <= target_bytes (else smallest)."""
    divs = _divisors(n, multiple_of)
    fitting = [b for b in divs if b * unit_bytes <= target_bytes]
    return max(fitting) if fitting else min(divs)


def _ensure_min_grid(n_c_total, cg, c_divs, n_h, th, h_divs, min_steps=4):
    """Best-effort shrink (cg, th) so the parallel grid has >= min_steps steps
    (v7x shards the parallel axes over 2 TensorCores)."""
    def steps(c, h):
        return (n_c_total // c) * (n_h // h)

    while steps(cg, th) < min_steps:
        c_smaller = [d for d in c_divs if d < cg]
        h_smaller = [d for d in h_divs if d < th]
        if c_smaller:
            cg = c_smaller[-1]
        elif h_smaller:
            th = h_smaller[-1]
        else:
            break
    return cg, th


def _vmem_limit(in_bytes, out_bytes, gen_bytes):
    # double-buffered in/out blocks + in-kernel scatter matrices + slack.
    # Cap at 48 MiB: v7x has only 64 MiB per TensorCore.
    need = 2 * (in_bytes + out_bytes) + gen_bytes + (4 << 20)
    return int(min(max(need, 32 << 20), 48 << 20))


def _per_dir_target(target_block_bytes, gen_bytes):
    # Keep 2*(in+out)+gen+slack under the 48 MiB VMEM request.
    budget = max(((48 << 20) - gen_bytes - (4 << 20)) // 4, 1 << 20)
    return min(target_block_bytes, budget)


# ---------------------------------------------------------------------------
# in-kernel 0/1 lane-scatter matrices (exact permutation, any float dtype)
# ---------------------------------------------------------------------------
def _lane_scatter_mats(factor, W, dtype):
    """swt[fw]: (W, W*factor) with swt[fw][w, w*factor+fw] = 1, else 0."""
    Wf = W * factor
    row = lax.broadcasted_iota(jnp.int32, (W, Wf), 0)
    col = lax.broadcasted_iota(jnp.int32, (W, Wf), 1)
    one = jnp.ones((), dtype)
    zero = jnp.zeros((), dtype)
    return [jnp.where(col == row * factor + fw, one, zero)
            for fw in range(factor)]


# ---------------------------------------------------------------------------
# kernels
# ---------------------------------------------------------------------------
def _unsqueeze_kernel(x_ref, o_ref, *, factor, cg, unroll):
    # x_ref : (Cg*f^2, Th, W)        input channel group, H tile (B,C flattened)
    # o_ref : (Cg, Th, f*Wf)         view of (..., Th*f, Wf) (lane-dense)
    f = factor
    f2 = f * f
    W = x_ref.shape[2]
    Wf = W * f
    dt = o_ref.dtype
    aligned = (Wf % 128) == 0
    swt = _lane_scatter_mats(f, W, dt)

    def body(c, carry):
        base = c * f2
        row_parts = []
        for fh in range(f):
            t = None
            for fw in range(f):
                xk = x_ref[base + fh * f + fw]                       # (Th, W)
                p = lax.dot_general(xk, swt[fw],
                                    (((1,), (0,)), ((), ())),
                                    preferred_element_type=dt)       # (Th, Wf)
                t = p if t is None else t + p                        # disjoint cols, exact
            if aligned:
                # lane-aligned unmasked store per fh; no concat copy needed
                o_ref[c, :, pl.ds(fh * Wf, Wf)] = t
            else:
                row_parts.append(t)
        if not aligned:
            # one full-width store per channel: (Th, f*Wf)
            o_ref[c] = jnp.concatenate(row_parts, axis=1)
        return carry

    lax.fori_loop(0, cg, body, 0, unroll=unroll)


def _squeeze_kernel(x_ref, o_ref, *, factor, cg, single_store, unroll):
    # x_ref : (Cg, Th, f*Wf)         view of (..., Th*f, Wf)
    # o_ref : (Cg, f^2, Th, W)       view of (..., Cg*f^2, Th, W)
    f = factor
    W = o_ref.shape[3]
    Wf = W * f
    dt = o_ref.dtype
    swt = _lane_scatter_mats(f, W, dt)

    def body(c, carry):
        pieces = []
        for fh in range(f):
            xsub = x_ref[c, :, pl.ds(fh * Wf, Wf)]                   # (Th, Wf)
            for fw in range(f):
                # gather every f-th lane: contract Wf of (Th,Wf) with (W,Wf)
                p = lax.dot_general(xsub, swt[fw],
                                    (((1,), (1,)), ((), ())),
                                    preferred_element_type=dt)       # (Th, W)
                if single_store:
                    pieces.append(p)
                else:
                    o_ref[c, fh * f + fw] = p                        # disjoint write
        if single_store:
            o_ref[c] = jnp.stack(pieces, axis=0)                     # (f^2, Th, W)
        return carry

    lax.fori_loop(0, cg, body, 0, unroll=unroll)


# ---------------------------------------------------------------------------
# wrappers
# ---------------------------------------------------------------------------
def unsqueeze2d_pallas(x, factor=2, *, target_block_bytes=8 << 20):
    assert isinstance(factor, int) and factor >= 1
    if factor == 1:
        return x
    B, C, H, W = x.shape
    f = factor
    f2 = f * f
    assert C % f2 == 0, (B, C, H, W)
    assert jnp.issubdtype(x.dtype, jnp.floating), x.dtype
    Cout = C // f2
    Wf = W * f
    itemsize = jnp.dtype(x.dtype).itemsize
    sub = 16 if itemsize == 2 else 8

    gen_bytes = f * W * Wf * itemsize
    # Th bounds the live (Th, f*Wf) row-block (input dtype) to ~128 KiB.
    Th = _pick_block(H, f * Wf * itemsize, 128 << 10, multiple_of=sub)
    # Cg fills the per-step DMA block (in == out bytes) up to the target.
    Cg = _pick_block(Cout, f2 * Th * W * itemsize,
                     _per_dir_target(target_block_bytes, gen_bytes))
    Cg, Th = _ensure_min_grid(B * Cout, Cg, _divisors(Cout),
                              H, Th, _divisors(H, sub))

    in_bytes = Cg * f2 * Th * W * itemsize
    out_bytes = Cg * Th * f * Wf * itemsize

    x_flat = x.reshape(B * C, H, W)                    # free view (merge B, C)
    kernel = functools.partial(_unsqueeze_kernel, factor=f, cg=Cg,
                               unroll=min(8, Cg))
    out_view = pl.pallas_call(
        kernel,
        out_shape=jax.ShapeDtypeStruct((B * Cout, H, f * Wf), x.dtype),
        grid_spec=pltpu.PrefetchScalarGridSpec(
            num_scalar_prefetch=0,
            grid=(B * Cout // Cg, H // Th),
            in_specs=[pl.BlockSpec((Cg * f2, Th, W), lambda c, h: (c, h, 0))],
            out_specs=pl.BlockSpec((Cg, Th, f * Wf), lambda c, h: (c, h, 0)),
        ),
        compiler_params=pltpu.CompilerParams(
            dimension_semantics=("parallel", "parallel"),
            vmem_limit_bytes=_vmem_limit(in_bytes, out_bytes, gen_bytes)),
    )(x_flat)
    # free reshape: (B*Cout, H, f*Wf) -> (B, Cout, H*f, Wf)
    return out_view.reshape(B, Cout, H * f, Wf)


def squeeze2d_pallas(x, factor=2, *, target_block_bytes=8 << 20,
                     single_store_bytes=256 << 10):
    assert isinstance(factor, int) and factor >= 1
    if factor == 1:
        return x
    B, C, Hf, Wfull = x.shape
    f = factor
    f2 = f * f
    assert Hf % f == 0 and Wfull % f == 0, (Hf, Wfull)
    assert jnp.issubdtype(x.dtype, jnp.floating), x.dtype
    H, W = Hf // f, Wfull // f
    Wf = W * f
    itemsize = jnp.dtype(x.dtype).itemsize
    sub = 16 if itemsize == 2 else 8

    gen_bytes = f * W * Wf * itemsize
    Th = _pick_block(H, f * Wf * itemsize, 128 << 10, multiple_of=sub)
    Cg = _pick_block(C, f2 * Th * W * itemsize,
                     _per_dir_target(target_block_bytes, gen_bytes))
    Cg, Th = _ensure_min_grid(B * C, Cg, _divisors(C), H, Th, _divisors(H, sub))
    single_store = (f2 * Th * W * itemsize) <= single_store_bytes

    in_bytes = Cg * Th * f * Wf * itemsize
    out_bytes = Cg * f2 * Th * W * itemsize

    # free view: x[b, c, h*f+fh, col] == x_view[b*C + c, h, fh*Wf + col]
    x_view = x.reshape(B * C, H, f * Wf)
    kernel = functools.partial(_squeeze_kernel, factor=f, cg=Cg,
                               single_store=single_store, unroll=min(8, Cg))
    out_view = pl.pallas_call(
        kernel,
        out_shape=jax.ShapeDtypeStruct((B * C, f2, H, W), x.dtype),
        grid_spec=pltpu.PrefetchScalarGridSpec(
            num_scalar_prefetch=0,
            grid=(B * C // Cg, H // Th),
            in_specs=[pl.BlockSpec((Cg, Th, f * Wf), lambda c, h: (c, h, 0))],
            out_specs=pl.BlockSpec((Cg, f2, Th, W), lambda c, h: (c, 0, h, 0)),
        ),
        compiler_params=pltpu.CompilerParams(
            dimension_semantics=("parallel", "parallel"),
            vmem_limit_bytes=_vmem_limit(in_bytes, out_bytes, gen_bytes)),
    )(x_view)
    # free reshape: (B*C, f^2, H, W) -> (B, C*f^2, H, W)
    return out_view.reshape(B, C * f2, H, W)


class UnsqueezeLayer:
    """Pallas port of the PyTorch UnsqueezeLayer (no learnable parameters)."""

    def __init__(self, factor):
        self.factor = factor

    def __call__(self, in_tensor, reverse=False):
        if not reverse:
            return unsqueeze2d_pallas(in_tensor, self.factor)
        return squeeze2d_pallas(in_tensor, self.factor)


# ---------------------------------------------------------------------------
# plain-JAX references (verification only)
# ---------------------------------------------------------------------------
def _unsqueeze2d_ref(x, factor):
    B, C, H, W = x.shape
    f2 = factor ** 2
    y = x.reshape(B, C // f2, factor, factor, H, W)
    y = jnp.transpose(y, (0, 1, 4, 2, 5, 3))
    return y.reshape(B, C // f2, H * factor, W * factor)


def _squeeze2d_ref(x, factor):
    B, C, H, W = x.shape
    y = x.reshape(B, C, H // factor, factor, W // factor, factor)
    y = jnp.transpose(y, (0, 1, 3, 5, 2, 4))
    return y.reshape(B, C * factor * factor, H // factor, W // factor)


if __name__ == "__main__":
    key = jax.random.PRNGKey(0)
    layer = UnsqueezeLayer(2)

    # Case 1: float32, B=2, C=8, H=W=16 -> (2, 2, 32, 32); round trip.
    x = jax.random.normal(key, (2, 8, 16, 16), dtype=jnp.float32)
    y = jax.block_until_ready(layer(x, reverse=False))
    assert y.shape == (2, 2, 32, 32), y.shape
    assert y.dtype == x.dtype
    assert jnp.array_equal(y, _unsqueeze2d_ref(x, 2)), "unsqueeze2d mismatch"

    xb = jax.block_until_ready(layer(y, reverse=True))
    assert xb.shape == x.shape
    assert jnp.array_equal(xb, _squeeze2d_ref(y, 2)), "squeeze2d mismatch"
    assert jnp.array_equal(xb, x), "round-trip mismatch"

    # Case 2: bfloat16 (exact even with bf16 accumulation: 0/1 permutation).
    x2 = jax.random.normal(jax.random.fold_in(key, 1), (2, 4, 8, 8),
                           dtype=jnp.bfloat16)
    y2 = jax.block_until_ready(layer(x2, reverse=False))
    assert y2.shape == (2, 1, 16, 16), y2.shape
    assert y2.dtype == x2.dtype
    assert jnp.array_equal(y2, _unsqueeze2d_ref(x2, 2)), "bf16 unsqueeze mismatch"
    x2b = jax.block_until_ready(layer(y2, reverse=True))
    assert jnp.array_equal(x2b, x2), "bf16 round-trip mismatch"

    # Case 3: Wf == 128 exercises the lane-aligned per-fh store path and the
    # per-(fh,fw) squeeze store path (single_store forced off).
    x3 = jax.random.normal(jax.random.fold_in(key, 2), (1, 8, 8, 64),
                           dtype=jnp.float32)
    y3 = jax.block_until_ready(unsqueeze2d_pallas(x3, 2))
    assert y3.shape == (1, 2, 16, 128), y3.shape
    assert jnp.array_equal(y3, _unsqueeze2d_ref(x3, 2)), "aligned unsqueeze mismatch"
    x3b = jax.block_until_ready(squeeze2d_pallas(y3, 2, single_store_bytes=0))
    assert jnp.array_equal(x3b, _squeeze2d_ref(y3, 2)), "multi-store squeeze mismatch"
    assert jnp.array_equal(x3b, x3), "aligned round-trip mismatch"

    print("KERNEL_OK")
</pallas_src>

<mosaic_0001>
module attributes {stable_mosaic.version = 11 : i64} {
  func.func @_unsqueeze_kernel(%arg0: i32, %arg1: i32, %arg2: memref<4x16x16xf32, #tpu.memory_space<vmem>>, %arg3: memref<1x16x64xf32, #tpu.memory_space<vmem>>) attributes {dimension_semantics = [#tpu.dimension_semantics<parallel>, #tpu.dimension_semantics<parallel>], iteration_bounds = array<i64: 4, 1>, scalar_prefetch = 0 : i64, scratch_operands = 0 : i64, tpu.core_type = #tpu.core_type<tc>, window_params = [{transform_indices = @transform_0, window_bounds = array<i64: 4, 16, 16>}, {transform_indices = @transform_1, window_bounds = array<i64: 1, 16, 64>}]} {
    %0 = tpu.iota {dimensions = array<i32: 0>} : vector<16x32xi32>
    %1 = tpu.iota {dimensions = array<i32: 1>} : vector<16x32xi32>
    %c2_i32 = arith.constant 2 : i32
    %2 = vector.broadcast %c2_i32 : i32 to vector<16x32xi32>
    %3 = arith.muli %0, %2 : vector<16x32xi32>
    %c0_i32 = arith.constant 0 : i32
    %4 = vector.broadcast %c0_i32 : i32 to vector<16x32xi32>
    %5 = arith.addi %3, %4 : vector<16x32xi32>
    %6 = arith.cmpi eq, %1, %5 : vector<16x32xi32>
    %cst = arith.constant 1.000000e+00 : f32
    %cst_0 = arith.constant 0.000000e+00 : f32
    %7 = vector.broadcast %cst : f32 to vector<16x32xf32>
    %8 = vector.broadcast %cst_0 : f32 to vector<16x32xf32>
    %9 = arith.select %6, %7, %8 : vector<16x32xi1>, vector<16x32xf32>
    %c2_i32_1 = arith.constant 2 : i32
    %10 = vector.broadcast %c2_i32_1 : i32 to vector<16x32xi32>
    %11 = arith.muli %0, %10 : vector<16x32xi32>
    %c1_i32 = arith.constant 1 : i32
    %12 = vector.broadcast %c1_i32 : i32 to vector<16x32xi32>
    %13 = arith.addi %11, %12 : vector<16x32xi32>
    %14 = arith.cmpi eq, %1, %13 : vector<16x32xi32>
    %cst_2 = arith.constant 1.000000e+00 : f32
    %cst_3 = arith.constant 0.000000e+00 : f32
    %15 = vector.broadcast %cst_2 : f32 to vector<16x32xf32>
    %16 = vector.broadcast %cst_3 : f32 to vector<16x32xf32>
    %17 = arith.select %14, %15, %16 : vector<16x32xi1>, vector<16x32xf32>
    %c0_i32_4 = arith.constant 0 : i32
    %c4_i32 = arith.constant 4 : i32
    %18 = arith.muli %c0_i32_4, %c4_i32 : i32
    %c0_i32_5 = arith.constant 0 : i32
    %19 = arith.addi %18, %c0_i32_5 : i32
    %c0_i32_6 = arith.constant 0 : i32
    %20 = arith.addi %19, %c0_i32_6 : i32
    %21 = arith.index_cast %20 : i32 to index
    %c0 = arith.constant 0 : index
    %c0_7 = arith.constant 0 : index
    %22 = vector.load %arg2[%21, %c0, %c0_7] : memref<4x16x16xf32, #tpu.memory_space<vmem>>, vector<1x16x16xf32>
    %23 = vector.shape_cast %22 : vector<1x16x16xf32> to vector<16x16xf32>
    %cst_8 = arith.constant dense<0.000000e+00> : vector<16x32xf32>
    %24 = tpu.matmul %23, %9, %cst_8 {dimension_numbers = #tpu.dot_dimension_numbers<[1], [0], [0], [1], [0, 0, 1, 1], [], []>} : vector<16x16xf32>, vector<16x32xf32>, vector<16x32xf32> -> vector<16x32xf32>
    %c0_i32_9 = arith.constant 0 : i32
    %25 = arith.addi %18, %c0_i32_9 : i32
    %c1_i32_10 = arith.constant 1 : i32
    %26 = arith.addi %25, %c1_i32_10 : i32
    %27 = arith.index_cast %26 : i32 to index
    %c0_11 = arith.constant 0 : index
    %c0_12 = arith.constant 0 : index
    %28 = vector.load %arg2[%27, %c0_11, %c0_12] : memref<4x16x16xf32, #tpu.memory_space<vmem>>, vector<1x16x16xf32>
    %29 = vector.shape_cast %28 : vector<1x16x16xf32> to vector<16x16xf32>
    %cst_13 = arith.constant dense<0.000000e+00> : vector<16x32xf32>
    %30 = tpu.matmul %29, %17, %cst_13 {dimension_numbers = #tpu.dot_dimension_numbers<[1], [0], [0], [1], [0, 0, 1, 1], [], []>} : vector<16x16xf32>, vector<16x32xf32>, vector<16x32xf32> -> vector<16x32xf32>
    %31 = arith.addf %24, %30 : vector<16x32xf32>
    %c2_i32_14 = arith.constant 2 : i32
    %32 = arith.addi %18, %c2_i32_14 : i32
    %c0_i32_15 = arith.constant 0 : i32
    %33 = arith.addi %32, %c0_i32_15 : i32
    %34 = arith.index_cast %33 : i32 to index
    %c0_16 = arith.constant 0 : index
    %c0_17 = arith.constant 0 : index
    %35 = vector.load %arg2[%34, %c0_16, %c0_17] : memref<4x16x16xf32, #tpu.memory_space<vmem>>, vector<1x16x16xf32>
    %36 = vector.shape_cast %35 : vector<1x16x16xf32> to vector<16x16xf32>
    %cst_18 = arith.constant dense<0.000000e+00> : vector<16x32xf32>
    %37 = tpu.matmul %36, %9, %cst_18 {dimension_numbers = #tpu.dot_dimension_numbers<[1], [0], [0], [1], [0, 0, 1, 1], [], []>} : vector<16x16xf32>, vector<16x32xf32>, vector<16x32xf32> -> vector<16x32xf32>
    %c2_i32_19 = arith.constant 2 : i32
    %38 = arith.addi %18, %c2_i32_19 : i32
    %c1_i32_20 = arith.constant 1 : i32
    %39 = arith.addi %38, %c1_i32_20 : i32
    %40 = arith.index_cast %39 : i32 to index
    %c0_21 = arith.constant 0 : index
    %c0_22 = arith.constant 0 : index
    %41 = vector.load %arg2[%40, %c0_21, %c0_22] : memref<4x16x16xf32, #tpu.memory_space<vmem>>, vector<1x16x16xf32>
    %42 = vector.shape_cast %41 : vector<1x16x16xf32> to vector<16x16xf32>
    %cst_23 = arith.constant dense<0.000000e+00> : vector<16x32xf32>
    %43 = tpu.matmul %42, %17, %cst_23 {dimension_numbers = #tpu.dot_dimension_numbers<[1], [0], [0], [1], [0, 0, 1, 1], [], []>} : vector<16x16xf32>, vector<16x32xf32>, vector<16x32xf32> -> vector<16x32xf32>
    %44 = arith.addf %37, %43 : vector<16x32xf32>
    %45 = tpu.concatenate %31, %44 in 1 : vector<16x32xf32>, vector<16x32xf32> -> vector<16x64xf32>
    %46 = arith.index_cast %c0_i32_4 : i32 to index
    %c0_24 = arith.constant 0 : index
    %c0_25 = arith.constant 0 : index
    %47 = vector.load %arg3[%46, %c0_24, %c0_25] : memref<1x16x64xf32, #tpu.memory_space<vmem>>, vector<1x16x64xf32>
    %48 = vector.shape_cast %47 : vector<1x16x64xf32> to vector<16x64xf32>
    %49 = vector.shape_cast %45 : vector<16x64xf32> to vector<1x16x64xf32>
    tpu.vector_store %arg3[%46, %c0_24, %c0_25], %49 {strides = array<i32>} : memref<1x16x64xf32, #tpu.memory_space<vmem>>, vector<1x16x64xf32>,
    %c1_i32_26 = arith.constant 1 : i32
    return
  }
  func.func @transform_0(%arg0: i32, %arg1: i32) -> (i32, i32, i32) {
    %c0_i32 = arith.constant 0 : i32
    %c0_i32_0 = arith.constant 0 : i32
    return %arg0, %arg1, %c0_i32 : i32, i32, i32
  }
  func.func @transform_1(%arg0: i32, %arg1: i32) -> (i32, i32, i32) {
    %c0_i32 = arith.constant 0 : i32
    %c0_i32_0 = arith.constant 0 : i32
    return %arg0, %arg1, %c0_i32 : i32, i32, i32
  }
}

</mosaic_0001>

<llo_original>
// kernel: tpu_custom_call.1
$region0: #{tpu_custom_call.1}
  #allocation0 [shape = 'u32[]', space=smem, size = 0x4, offset = 0x4, fixed_abs, tag = 'smem constant byte address 0x4 - core index']
  #allocation1 [shape = 'u32[144,128]{1,0:T(1,128)}', space=vmem, size = 0x12000, scoped, tag = 'internal scratch']
  %s0 = inlined_call_operand.hbm [shape: f32[16,16,16], index: 0, kind: input, shape index: {}]
  %s1 = inlined_call_operand.hbm [shape: f32[4,16,64], index: 1, kind: output, shape index: {}]
  %s2 = sld [smem:[#allocation0]]
  $region41: #{tpu_custom_call.1} parent=0
    _
  %s4 = ssub.s32 1, %s2
  %s5 = scalar_select 0, %s4, %s2
  $region1: #{tpu_custom_call.1} parent=0
    #allocation2 [shape = 'u8[65536]{0}', space=vmem, size = 0x10000, scoped, tag = 'input window, operand 0']
    #allocation3 [shape = 's32[2]{0}', space=sflag, size = 0x8, scoped, tag = 'scoped memory for tpu_custom_call.1']
    #allocation4 [shape = 's32[2]{0}', space=sflag, size = 0x8, scoped, tag = 'scoped memory for tpu_custom_call.1']
    #allocation5 [shape = 'u8[16384]{0}', space=vmem, size = 0x4000, scoped, tag = 'output window, operand 0']
    %6 = vsyncpa [#allocation3], 0
    %s7 = scalar_lea.sflag [#allocation3], 1
    %8 = vsyncpa %s7, 0
    %9 = vsyncpa [#allocation4], 0
    %s10 = scalar_lea.sflag [#allocation4], 1
    %11 = vsyncpa %s10, 0
    loop: start=0, step=1, limit=6
    $region2: #{tpu_custom_call.1} parent=1 // loop_pre_header
      _
    $region3: #{tpu_custom_call.1} parent=1 // loop_header
      %s13 = sphi 0, %s17
      %p14 = scmp.ge.s32.totalorder %s13, 6
      %s20 = sphi 0, %s32
      %s21 = sphi 0, %s28
      %s22 = sphi 0, %s20
      %s23 = sphi 0, %s21
      %s24 = sphi 0, %s22
      %s25 = sphi 0, %s23
      %s37 = sphi 0, %s39
      %s40 = sphi 0, %s37
      %s41 = sphi 0, %s40
      %s57 = sphi 0, %s41
      %s65 = sphi 0, %s67
      %s68 = sphi 0, %s65
      %s69 = sphi 0, %s68
      %s85 = sphi 0, %s69
    $region4: #{tpu_custom_call.1} parent=1 // loop_header_branch
      %16 = sbr.rel (%p14) target = $region8
    $region5: #{tpu_custom_call.1} parent=1 // loop_body
      %s18 = ssub.s32 %s13, 1
      %s19 = ssub.s32 %s13, 2
      %s26 = sadd.s32 1, %s21
      %p27 = scmp.ge.s32.totalorder %s26, 1
      %s28 = scalar_select %p27, 0, %s26
      %s29 = sadd.s32 1, %s20
      %s30 = scalar_select %p27, %s29, %s20
      %p31 = scmp.ge.s32.totalorder %s30, 4
      %s32 = scalar_select %p31, 0, %s30
      %s33 = ssub.s32 %s20, %s32
      %s34 = ssub.s32 %s21, %s28
      %s35 = sor.u32 %s33, %s34
      %p36 = scmp.eq.s32.totalorder %s35, 0
      %s38 = sadd.s32 %s37, 1
      %s39 = scalar_select %p36, %s37, %s38
      %p42 = pneg %p36
      %p43 = scmp.eq.s32.totalorder %s13, 3
      %p44 = por %p42, %p43
      %p45 = scmp.ne.s32.totalorder %s37, %s40
      %p46 = scmp.eq.s32.totalorder %s13, 0
      %p47 = por %p45, %p46
      %p48 = scmp.ne.s32.totalorder %s37, %s40
      %p49 = scmp.eq.s32.totalorder %s18, 3
      %p50 = por %p48, %p49
      %p51 = scmp.ne.s32.totalorder %s40, %s41
      %p52 = scmp.eq.s32.totalorder %s18, 0
      %p53 = por %p51, %p52
      %p54 = scmp.ne.s32.totalorder %s40, %s41
      %p55 = scmp.eq.s32.totalorder %s19, 3
      %p56 = por %p54, %p55
      %p58 = scmp.ne.s32.totalorder %s41, %s57
      %p59 = scmp.eq.s32.totalorder %s19, 0
      %p60 = por %p58, %p59
      %s61 = ssub.s32 %s20, %s32
      %s62 = ssub.s32 %s21, %s28
      %s63 = sor.u32 %s61, %s62
      %p64 = scmp.eq.s32.totalorder %s63, 0
      %s66 = sadd.s32 %s65, 1
      %s67 = scalar_select %p64, %s65, %s66
      %p70 = pneg %p64
      %p71 = scmp.eq.s32.totalorder %s13, 3
      %p72 = por %p70, %p71
      %p73 = scmp.ne.s32.totalorder %s65, %s68
      %p74 = scmp.eq.s32.totalorder %s13, 0
      %p75 = por %p73, %p74
      %p76 = scmp.ne.s32.totalorder %s65, %s68
      %p77 = scmp.eq.s32.totalorder %s18, 3
      %p78 = por %p76, %p77
      %p79 = scmp.ne.s32.totalorder %s68, %s69
      %p80 = scmp.eq.s32.totalorder %s18, 0
      %p81 = por %p79, %p80
      %p82 = scmp.ne.s32.totalorder %s68, %s69
      %p83 = scmp.eq.s32.totalorder %s19, 3
      %p84 = por %p82, %p83
      %p86 = scmp.ne.s32.totalorder %s69, %s85
      %p87 = scmp.eq.s32.totalorder %s19, 0
      %p88 = por %p86, %p87
      %p89 = scmp.le.s32.totalorder 1, %s13
      %p90 = scmp.lt.s32.totalorder %s13, 5
      %p91 = pnand %p89, %p90
      %p92 = pneg %p91
      // Predicated region
      $region9: #{tpu_custom_call.1} parent=5 // pred_check
        _
      $region10: #{tpu_custom_call.1} parent=5 // pred_check_branch
        %94 = sbr.rel (%p91) target = $region12
      $region11: #{tpu_custom_call.1} parent=5 // pred_region
        %s95 = ssub.s32 %s13, 1
      $region12: #{tpu_custom_call.1} parent=5 // pred_fallthru
        _
      %p96 = scmp.lt.s32.totalorder %s13, 4
      // Predicated region
      $region13: #{tpu_custom_call.1} parent=5 // pred_check
        %p97 = pneg %p96
      $region14: #{tpu_custom_call.1} parent=5 // pred_check_branch
        %99 = sbr.rel (%p97) target = $region16
      $region15: #{tpu_custom_call.1} parent=5 // pred_region
        // Predicated region
        $region17: #{tpu_custom_call.1} parent=15 // pred_check
          %p100 = pneg %p47
        $region18: #{tpu_custom_call.1} parent=15 // pred_check_branch
          %102 = sbr.rel (%p100) target = $region20
        $region19: #{tpu_custom_call.1} parent=15 // pred_region
          %s103 = sand.u32 %s37, 1
          %s104 = scalar_lea.sflag [#allocation3], %s103
          %s105 = sand.u32 %s37, 1
          %s106 = smul.addr %s105, 64
          %s107 = scalar_lea.vmem [#allocation2], %s106
          %s108 = smul.u32 4, %s20
          %s109 = smul.u32 2, %s21
          %s111 = ssub.s32 1024, 1024
          %112 = vsyncadd %s104, %s111
          %s113 = smul.addr %s108, 2
          %s114 = sadd.s32 %s109, %s113
          %s115 = smul.addr %s114, 128
          %s116 = scalar_lea.hbm %s0, %s115
          %s117 = sshll.u32 %s107, 4
          %s118 = int_to_ptr.vmem [resolvable:$true] %s117
          %123 = dma.hbm_to_vmem [thread:$0]  %s116, 1024, %s118, %s104, 128, 128, 8
        $region20: #{tpu_custom_call.1} parent=15 // pred_fallthru
          _
      $region16: #{tpu_custom_call.1} parent=5 // pred_fallthru
        _
      %p124 = scmp.le.s32.totalorder 1, %s13
      %p125 = scmp.lt.s32.totalorder %s13, 5
      %p126 = pnand %p124, %p125
      %p127 = pneg %p126
      // Predicated region
      $region21: #{tpu_custom_call.1} parent=5 // pred_check
        _
      $region22: #{tpu_custom_call.1} parent=5 // pred_check_branch
        %129 = sbr.rel (%p126) target = $region24
      $region23: #{tpu_custom_call.1} parent=5 // pred_region
        %s130 = ssub.s32 %s13, 1
        %s131 = sand.u32 %s40, 1
        %s132 = scalar_lea.sflag [#allocation3], %s131
        %s133 = sand.u32 %s40, 1
        %s134 = smul.addr %s133, 64
        %s135 = scalar_lea.vmem [#allocation2], %s134
        // Predicated region
        $region25: #{tpu_custom_call.1} parent=23 // pred_check
          %p136 = pneg %p53
        $region26: #{tpu_custom_call.1} parent=23 // pred_check_branch
          %138 = sbr.rel (%p136) target = $region28
        $region27: #{tpu_custom_call.1} parent=23 // pred_region
          %139 = dma.done %s132, 1024
        $region28: #{tpu_custom_call.1} parent=23 // pred_fallthru
          _
        %s140 = sand.u32 %s40, 1
        %s141 = scalar_lea.sflag [#allocation3], %s140
        %s142 = sand.u32 %s40, 1
        %s143 = smul.addr %s142, 64
        %s144 = scalar_lea.vmem [#allocation2], %s143
        %p145 = pneg %p53
        %p146 = pneg %p50
        %p147 = pneg %p81
        %p148 = pneg %p78
        %s149 = sand.u32 %s68, 1
        %s150 = scalar_lea.sflag [#allocation4], %s149
        %s151 = sand.u32 %s68, 1
        %s152 = smul.addr %s151, 16
        %s153 = scalar_lea.vmem [#allocation5], %s152
        %s154 = smul.u32 4, %s22
        %s155 = smul.u32 2, %s23
        %s156 = smul.u32 2, %s23
        %v157 = vlaneseq
        %v158 = vshrl.u32 %v157, 7
        %v159 = vadd.s32 %v158, 8
        %v160 = vlaneseq
        %v161 = vand.u32 %v160, 127
        %v162 = vmul.u32 %v158, 2
        %v163 = vmul.u32 %v159, 2
        %vm164 = vcmp.eq.s32.totalorder %v161, %v162
        %vm165 = vcmp.eq.s32.totalorder %v161, %v163
        %v166 = vsel %vm164, 1.0, 0.0
        %v167 = vsel %vm165, 1.0, 0.0
        %v168 = vadd.s32 %v162, 1
        %v169 = vadd.s32 %v163, 1
        %vm170 = vcmp.eq.s32.totalorder %v161, %v168
        %vm171 = vcmp.eq.s32.totalorder %v161, %v169
        %v172 = vsel %vm170, 1.0, 0.0
        %v173 = vsel %vm171, 1.0, 0.0
        %v174 = vld [vmem:[%s135] sm:$0xff]
        %v175 = vld [vmem:[%s135 + $0x8] sm:$0xff]
        %s176 = scalar_lea.vmem %s135, 16 [#allocation2]
        %v177 = vld [vmem:[%s176] sm:$0xff]
        %v178 = vld [vmem:[%s176 + $0x8] sm:$0xff]
        %vm179 = vcmask 130048
        %v181 = vsel %vm179, %v177, 0
        %v184 = vsel %vm179, %v178, 0
        %186 = vmatprep.subr.mxu0 0.0
        %187 = vmatpush1.msra.mxu0 0.0
        %188 = vmatprep.subr.mxu0 0.0
        %189 = vmatpush1.msra.mxu0 0.0
        %190 = vmatprep.subr.mxu0 0.0
        %191 = vmatpush1.msra.mxu0 0.0
        %192 = vmatprep.subr.mxu0 0.0
        %193 = vmatpush1.msra.mxu0 0.0
        %194 = vmatprep.subr.mxu0 0.0
        %195 = vmatpush1.msra.mxu0 0.0
        %196 = vmatprep.subr.mxu0 0.0
        %197 = vmatpush1.msra.mxu0 0.0
        %198 = vmatprep.subr.mxu0 0.0
        %199 = vmatpush1.msra.mxu0 0.0
        %200 = vmatprep.subr.mxu0 0.0
        %201 = vmatpush1.msra.mxu0 0.0
        %202 = vmatprep.subr.mxu0 0.0
        %203 = vmatpush1.msra.mxu0 0.0
        %204 = vmatprep.subr.mxu0 0.0
        %205 = vmatpush1.msra.mxu0 0.0
        %206 = vmatprep.subr.mxu0 0.0
        %207 = vmatpush1.msra.mxu0 0.0
        %208 = vmatprep.subr.mxu0 0.0
        %209 = vmatpush1.msra.mxu0 0.0
        %210 = vmatprep.subr.mxu0 0.0
        %211 = vmatpush1.msra.mxu0 0.0
        %212 = vmatprep.subr.mxu0 0.0
        %213 = vmatpush1.msra.mxu0 0.0
        %214 = vmatprep.subr.mxu0 0.0
        %215 = vmatpush1.msra.mxu0 %v173
        %216 = vmatprep.subr.mxu0 0.0
        %217 = vmatpush1.msra.mxu0 %v172
        %218 = vmatprep.subr.mxu0 0.0
        %219 = vmatpush2.msra.mxu0 0.0
        %220 = vmatprep.subr.mxu0 0.0
        %221 = vmatpush2.msra.mxu0 0.0
        %222 = vmatprep.subr.mxu0 0.0
        %223 = vmatpush2.msra.mxu0 0.0
        %224 = vmatprep.subr.mxu0 0.0
        %225 = vmatpush2.msra.mxu0 0.0
        %226 = vmatprep.subr.mxu0 0.0
        %227 = vmatpush2.msra.mxu0 0.0
        %228 = vmatprep.subr.mxu0 0.0
        %229 = vmatpush2.msra.mxu0 0.0
        %230 = vmatprep.subr.mxu0 0.0
        %231 = vmatpush2.msra.mxu0 0.0
        %232 = vmatprep.subr.mxu0 0.0
        %233 = vmatpush2.msra.mxu0 0.0
        %234 = vmatprep.subr.mxu0 0.0
        %235 = vmatpush2.msra.mxu0 0.0
        %236 = vmatprep.subr.mxu0 0.0
        %237 = vmatpush2.msra.mxu0 0.0
        %238 = vmatprep.subr.mxu0 0.0
        %239 = vmatpush2.msra.mxu0 0.0
        %240 = vmatprep.subr.mxu0 0.0
        %241 = vmatpush2.msra.mxu0 0.0
        %242 = vmatprep.subr.mxu0 0.0
        %243 = vmatpush2.msra.mxu0 0.0
        %244 = vmatprep.subr.mxu0 0.0
        %245 = vmatpush2.msra.mxu0 0.0
        %246 = vmatprep.subr.mxu0 0.0
        %247 = vmatpush2.msra.mxu0 0.0
        %248 = vmatprep.subr.mxu0 0.0
        %249 = vmatpush2.msra.mxu0 0.0
        %250 = vmatprep.mubr.f32.mxu0 0.0
        %251 = vmatmul.mubr.f32.gmra.mxu0 %v181
        %v252 = vpop.f32.mrf.mxu0
        %v253 = vadd.f32 0.0, %v252
        %v254 = vpop.f32.mrf.mxu0
        %255 = vmatprep.mubr.f32.mxu0 0.0
        %256 = vmatmul.mubr.f32.gmra.mxu0 %v184
        %v257 = vpop.f32.mrf.mxu0
        %v258 = vadd.f32 0.0, %v257
        %v259 = vpop.f32.mrf.mxu0
        %260 = vdwg.mxu0
        %v262 = vsel %vm179, %v174, 0
        %v265 = vsel %vm179, %v175, 0
        %267 = vmatprep.subr.mxu0 0.0
        %268 = vmatpush1.msra.mxu0 0.0
        %269 = vmatprep.subr.mxu0 0.0
        %270 = vmatpush1.msra.mxu0 0.0
        %271 = vmatprep.subr.mxu0 0.0
        %272 = vmatpush1.msra.mxu0 0.0
        %273 = vmatprep.subr.mxu0 0.0
        %274 = vmatpush1.msra.mxu0 0.0
        %275 = vmatprep.subr.mxu0 0.0
        %276 = vmatpush1.msra.mxu0 0.0
        %277 = vmatprep.subr.mxu0 0.0
        %278 = vmatpush1.msra.mxu0 0.0
        %279 = vmatprep.subr.mxu0 0.0
        %280 = vmatpush1.msra.mxu0 0.0
        %281 = vmatprep.subr.mxu0 0.0
        %282 = vmatpush1.msra.mxu0 0.0
        %283 = vmatprep.subr.mxu0 0.0
        %284 = vmatpush1.msra.mxu0 0.0
        %285 = vmatprep.subr.mxu0 0.0
        %286 = vmatpush1.msra.mxu0 0.0
        %287 = vmatprep.subr.mxu0 0.0
        %288 = vmatpush1.msra.mxu0 0.0
        %289 = vmatprep.subr.mxu0 0.0
        %290 = vmatpush1.msra.mxu0 0.0
        %291 = vmatprep.subr.mxu0 0.0
        %292 = vmatpush1.msra.mxu0 0.0
        %293 = vmatprep.subr.mxu0 0.0
        %294 = vmatpush1.msra.mxu0 0.0
        %295 = vmatprep.subr.mxu0 0.0
        %296 = vmatpush1.msra.mxu0 %v167
        %297 = vmatprep.subr.mxu0 0.0
        %298 = vmatpush1.msra.mxu0 %v166
        %299 = vmatprep.subr.mxu0 0.0
        %300 = vmatpush2.msra.mxu0 0.0
        %301 = vmatprep.subr.mxu0 0.0
        %302 = vmatpush2.msra.mxu0 0.0
        %303 = vmatprep.subr.mxu0 0.0
        %304 = vmatpush2.msra.mxu0 0.0
        %305 = vmatprep.subr.mxu0 0.0
        %306 = vmatpush2.msra.mxu0 0.0
        %307 = vmatprep.subr.mxu0 0.0
        %308 = vmatpush2.msra.mxu0 0.0
        %309 = vmatprep.subr.mxu0 0.0
        %310 = vmatpush2.msra.mxu0 0.0
        %311 = vmatprep.subr.mxu0 0.0
        %312 = vmatpush2.msra.mxu0 0.0
        %313 = vmatprep.subr.mxu0 0.0
        %314 = vmatpush2.msra.mxu0 0.0
        %315 = vmatprep.subr.mxu0 0.0
        %316 = vmatpush2.msra.mxu0 0.0
        %317 = vmatprep.subr.mxu0 0.0
        %318 = vmatpush2.msra.mxu0 0.0
        %319 = vmatprep.subr.mxu0 0.0
        %320 = vmatpush2.msra.mxu0 0.0
        %321 = vmatprep.subr.mxu0 0.0
        %322 = vmatpush2.msra.mxu0 0.0
        %323 = vmatprep.subr.mxu0 0.0
        %324 = vmatpush2.msra.mxu0 0.0
        %325 = vmatprep.subr.mxu0 0.0
        %326 = vmatpush2.msra.mxu0 0.0
        %327 = vmatprep.subr.mxu0 0.0
        %328 = vmatpush2.msra.mxu0 0.0
        %329 = vmatprep.subr.mxu0 0.0
        %330 = vmatpush2.msra.mxu0 0.0
        %331 = vmatprep.mubr.f32.mxu0 0.0
        %332 = vmatmul.mubr.f32.gmra.mxu0 %v262
        %v333 = vpop.f32.mrf.mxu0
        %v334 = vadd.f32 %v253, %v333
        %v335 = vpop.f32.mrf.mxu0
        %336 = vmatprep.mubr.f32.mxu0 0.0
        %337 = vmatmul.mubr.f32.gmra.mxu0 %v265
        %v338 = vpop.f32.mrf.mxu0
        %v339 = vadd.f32 %v258, %v338
        %v340 = vpop.f32.mrf.mxu0
        %341 = vdwg.mxu0
        %s342 = scalar_lea.vmem %s135, 32 [#allocation2]
        %v343 = vld [vmem:[%s342] sm:$0xff]
        %v344 = vld [vmem:[%s342 + $0x8] sm:$0xff]
        %s345 = scalar_lea.vmem %s135, 48 [#allocation2]
        %v346 = vld [vmem:[%s345] sm:$0xff]
        %v347 = vld [vmem:[%s345 + $0x8] sm:$0xff]
        %v349 = vsel %vm179, %v346, 0
        %v352 = vsel %vm179, %v347, 0
        %354 = vmatprep.subr.mxu0 0.0
        %355 = vmatpush1.msra.mxu0 0.0
        %356 = vmatprep.subr.mxu0 0.0
        %357 = vmatpush1.msra.mxu0 0.0
        %358 = vmatprep.subr.mxu0 0.0
        %359 = vmatpush1.msra.mxu0 0.0
        %360 = vmatprep.subr.mxu0 0.0
        %361 = vmatpush1.msra.mxu0 0.0
        %362 = vmatprep.subr.mxu0 0.0
        %363 = vmatpush1.msra.mxu0 0.0
        %364 = vmatprep.subr.mxu0 0.0
        %365 = vmatpush1.msra.mxu0 0.0
        %366 = vmatprep.subr.mxu0 0.0
        %367 = vmatpush1.msra.mxu0 0.0
        %368 = vmatprep.subr.mxu0 0.0
        %369 = vmatpush1.msra.mxu0 0.0
        %370 = vmatprep.subr.mxu0 0.0
        %371 = vmatpush1.msra.mxu0 0.0
        %372 = vmatprep.subr.mxu0 0.0
        %373 = vmatpush1.msra.mxu0 0.0
        %374 = vmatprep.subr.mxu0 0.0
        %375 = vmatpush1.msra.mxu0 0.0
        %376 = vmatprep.subr.mxu0 0.0
        %377 = vmatpush1.msra.mxu0 0.0
        %378 = vmatprep.subr.mxu0 0.0
        %379 = vmatpush1.msra.mxu0 0.0
        %380 = vmatprep.subr.mxu0 0.0
        %381 = vmatpush1.msra.mxu0 0.0
        %382 = vmatprep.subr.mxu0 0.0
        %383 = vmatpush1.msra.mxu0 %v173
        %384 = vmatprep.subr.mxu0 0.0
        %385 = vmatpush1.msra.mxu0 %v172
        %386 = vmatprep.subr.mxu0 0.0
        %387 = vmatpush2.msra.mxu0 0.0
        %388 = vmatprep.subr.mxu0 0.0
        %389 = vmatpush2.msra.mxu0 0.0
        %390 = vmatprep.subr.mxu0 0.0
        %391 = vmatpush2.msra.mxu0 0.0
        %392 = vmatprep.subr.mxu0 0.0
        %393 = vmatpush2.msra.mxu0 0.0
        %394 = vmatprep.subr.mxu0 0.0
        %395 = vmatpush2.msra.mxu0 0.0
        %396 = vmatprep.subr.mxu0 0.0
        %397 = vmatpush2.msra.mxu0 0.0
        %398 = vmatprep.subr.mxu0 0.0
        %399 = vmatpush2.msra.mxu0 0.0
        %400 = vmatprep.subr.mxu0 0.0
        %401 = vmatpush2.msra.mxu0 0.0
        %402 = vmatprep.subr.mxu0 0.0
        %403 = vmatpush2.msra.mxu0 0.0
        %404 = vmatprep.subr.mxu0 0.0
        %405 = vmatpush2.msra.mxu0 0.0
        %406 = vmatprep.subr.mxu0 0.0
        %407 = vmatpush2.msra.mxu0 0.0
        %408 = vmatprep.subr.mxu0 0.0
        %409 = vmatpush2.msra.mxu0 0.0
        %410 = vmatprep.subr.mxu0 0.0
        %411 = vmatpush2.msra.mxu0 0.0
        %412 = vmatprep.subr.mxu0 0.0
        %413 = vmatpush2.msra.mxu0 0.0
        %414 = vmatprep.subr.mxu0 0.0
        %415 = vmatpush2.msra.mxu0 0.0
        %416 = vmatprep.subr.mxu0 0.0
        %417 = vmatpush2.msra.mxu0 0.0
        %418 = vmatprep.mubr.f32.mxu0 0.0
        %419 = vmatmul.mubr.f32.gmra.mxu0 %v349
        %v420 = vpop.f32.mrf.mxu0
        %v421 = vadd.f32 0.0, %v420
        %v422 = vpop.f32.mrf.mxu0
        %423 = vmatprep.mubr.f32.mxu0 0.0
        %424 = vmatmul.mubr.f32.gmra.mxu0 %v352
        %v425 = vpop.f32.mrf.mxu0
        %v426 = vadd.f32 0.0, %v425
        %v427 = vpop.f32.mrf.mxu0
        %428 = vdwg.mxu0
        %v430 = vsel %vm179, %v343, 0
        %v433 = vsel %vm179, %v344, 0
        %435 = vmatprep.subr.mxu0 0.0
        %436 = vmatpush1.msra.mxu0 0.0
        %437 = vmatprep.subr.mxu0 0.0
        %438 = vmatpush1.msra.mxu0 0.0
        %439 = vmatprep.subr.mxu0 0.0
        %440 = vmatpush1.msra.mxu0 0.0
        %441 = vmatprep.subr.mxu0 0.0
        %442 = vmatpush1.msra.mxu0 0.0
        %443 = vmatprep.subr.mxu0 0.0
        %444 = vmatpush1.msra.mxu0 0.0
        %445 = vmatprep.subr.mxu0 0.0
        %446 = vmatpush1.msra.mxu0 0.0
        %447 = vmatprep.subr.mxu0 0.0
        %448 = vmatpush1.msra.mxu0 0.0
        %449 = vmatprep.subr.mxu0 0.0
        %450 = vmatpush1.msra.mxu0 0.0
        %451 = vmatprep.subr.mxu0 0.0
        %452 = vmatpush1.msra.mxu0 0.0
        %453 = vmatprep.subr.mxu0 0.0
        %454 = vmatpush1.msra.mxu0 0.0
        %455 = vmatprep.subr.mxu0 0.0
        %456 = vmatpush1.msra.mxu0 0.0
        %457 = vmatprep.subr.mxu0 0.0
        %458 = vmatpush1.msra.mxu0 0.0
        %459 = vmatprep.subr.mxu0 0.0
        %460 = vmatpush1.msra.mxu0 0.0
        %461 = vmatprep.subr.mxu0 0.0
        %462 = vmatpush1.msra.mxu0 0.0
        %463 = vmatprep.subr.mxu0 0.0
        %464 = vmatpush1.msra.mxu0 %v167
        %465 = vmatprep.subr.mxu0 0.0
        %466 = vmatpush1.msra.mxu0 %v166
        %467 = vmatprep.subr.mxu0 0.0
        %468 = vmatpush2.msra.mxu0 0.0
        %469 = vmatprep.subr.mxu0 0.0
        %470 = vmatpush2.msra.mxu0 0.0
        %471 = vmatprep.subr.mxu0 0.0
        %472 = vmatpush2.msra.mxu0 0.0
        %473 = vmatprep.subr.mxu0 0.0
        %474 = vmatpush2.msra.mxu0 0.0
        %475 = vmatprep.subr.mxu0 0.0
        %476 = vmatpush2.msra.mxu0 0.0
        %477 = vmatprep.subr.mxu0 0.0
        %478 = vmatpush2.msra.mxu0 0.0
        %479 = vmatprep.subr.mxu0 0.0
        %480 = vmatpush2.msra.mxu0 0.0
        %481 = vmatprep.subr.mxu0 0.0
        %482 = vmatpush2.msra.mxu0 0.0
        %483 = vmatprep.subr.mxu0 0.0
        %484 = vmatpush2.msra.mxu0 0.0
        %485 = vmatprep.subr.mxu0 0.0
        %486 = vmatpush2.msra.mxu0 0.0
        %487 = vmatprep.subr.mxu0 0.0
        %488 = vmatpush2.msra.mxu0 0.0
        %489 = vmatprep.subr.mxu0 0.0
        %490 = vmatpush2.msra.mxu0 0.0
        %491 = vmatprep.subr.mxu0 0.0
        %492 = vmatpush2.msra.mxu0 0.0
        %493 = vmatprep.subr.mxu0 0.0
        %494 = vmatpush2.msra.mxu0 0.0
        %495 = vmatprep.subr.mxu0 0.0
        %496 = vmatpush2.msra.mxu0 0.0
        %497 = vmatprep.subr.mxu0 0.0
        %498 = vmatpush2.msra.mxu0 0.0
        %499 = vmatprep.mubr.f32.mxu0 0.0
        %500 = vmatmul.mubr.f32.gmra.mxu0 %v430
        %v501 = vpop.f32.mrf.mxu0
        %v502 = vadd.f32 %v421, %v501
        %v503 = vpop.f32.mrf.mxu0
        %504 = vmatprep.mubr.f32.mxu0 0.0
        %505 = vmatmul.mubr.f32.gmra.mxu0 %v433
        %v506 = vpop.f32.mrf.mxu0
        %v507 = vadd.f32 %v426, %v506
        %v508 = vpop.f32.mrf.mxu0
        %509 = vdwg.mxu0
        %512 = vrot.lane.b32.xlu0 %v502, 32
        %v513 = vpop.permute.xlu0 %512
        %514 = vrot.lane.b32.xlu0 %v507, 32
        %v515 = vpop.permute.xlu0 %514
        %vm518 = vcmask 261120
        %v519 = vsel %vm518, %v334, %v513
        %v520 = vsel %vm518, %v339, %v515
        %vm521 = vcmask 523264
        %522 = vst.msk [vmem:[%s153] sm:$0xff] %vm521, %v519
        %523 = vst.msk [vmem:[%s153 + $0x8] sm:$0xff] %vm521, %v520
        %s524 = sand.u32 %s68, 1
        %s525 = scalar_lea.sflag [#allocation4], %s524
        %s526 = sand.u32 %s68, 1
        %s527 = smul.addr %s526, 16
        %s528 = scalar_lea.vmem [#allocation5], %s527
        // Predicated region
        $region29: #{tpu_custom_call.1} parent=23 // pred_check
          %p529 = pneg %p78
        $region30: #{tpu_custom_call.1} parent=23 // pred_check_branch
          %531 = sbr.rel (%p529) target = $region32
        $region31: #{tpu_custom_call.1} parent=23 // pred_region
          %s532 = smul.u32 2, %s23
          %s534 = ssub.s32 256, 256
          %535 = vsyncadd %s525, %s534
          %s536 = smul.addr %s22, 2
          %s537 = sadd.s32 %s532, %s536
          %s538 = smul.addr %s537, 128
          %s539 = scalar_lea.hbm %s1, %s538
          %s540 = sshll.u32 %s528, 4
          %s541 = int_to_ptr.vmem [resolvable:$true] %s540
          %546 = dma.vmem_to_hbm [thread:$0]  %s541, 256, %s539, %s525, 128, 128, 8
        $region32: #{tpu_custom_call.1} parent=23 // pred_fallthru
          _
      $region24: #{tpu_custom_call.1} parent=5 // pred_fallthru
        _
      %p547 = scmp.le.s32.totalorder 2, %s13
      // Predicated region
      $region33: #{tpu_custom_call.1} parent=5 // pred_check
        %p548 = pneg %p547
      $region34: #{tpu_custom_call.1} parent=5 // pred_check_branch
        %550 = sbr.rel (%p548) target = $region36
      $region35: #{tpu_custom_call.1} parent=5 // pred_region
        %s551 = ssub.s32 %s13, 2
        // Predicated region
        $region37: #{tpu_custom_call.1} parent=35 // pred_check
          %p552 = pneg %p84
        $region38: #{tpu_custom_call.1} parent=35 // pred_check_branch
          %554 = sbr.rel (%p552) target = $region40
        $region39: #{tpu_custom_call.1} parent=35 // pred_region
          %s555 = sand.u32 %s69, 1
          %s556 = scalar_lea.sflag [#allocation4], %s555
          %s557 = sand.u32 %s69, 1
          %s558 = smul.addr %s557, 16
          %s559 = scalar_lea.vmem [#allocation5], %s558
          %560 = dma.done %s556, 256
        $region40: #{tpu_custom_call.1} parent=35 // pred_fallthru
          _
      $region36: #{tpu_custom_call.1} parent=5 // pred_fallthru
        _
    $region6: #{tpu_custom_call.1} parent=1 // loop_footer
      %s17 = sadd.s32 1, %s13
    $region7: #{tpu_custom_call.1} parent=1 // loop_footer_branch
      %12 = sbr.rel target = $region3
    $region8: #{tpu_custom_call.1} parent=1 // loop_exit
      _
    %561 = vsyncpa [#allocation3], 1
    %s562 = scalar_lea.sflag [#allocation3], 1
    %563 = vsyncpa %s562, 1
    %564 = vsyncpa [#allocation4], 1
    %s565 = scalar_lea.sflag [#allocation4], 1
    %566 = vsyncpa %s565, 1

</llo_original>
